<compile_context>
chip_gen: v5e
topology: v5e:2x2
jax: 0.10.0
libtpu: 0.0.40
codegen_flags: <defaults>
</compile_context>

<pallas_src>
import jax
import jax.numpy as jnp
from jax.experimental import pallas as pl
from jax.experimental.pallas import tpu as pltpu

IN, HID, OUT = 6, 11, 1


def _round_up(n: int, m: int) -> int:
    return ((n + m - 1) // m) * m


def _wnn_kernel(x_ref, w1_ref, b1_ref, w2_ref, b2_ref, o_ref):
    # x_ref : (6,  TB) f32, batch on lanes
    # w1_ref: (11, 6)  = 0.5 * W1
    # b1_ref: (11, 1)  = 0.5 * b1
    # w2_ref: (11, 1)  = 0.5 * w2^T
    # b2_ref: (1, 1)   = b2 + 0.5 * sum(w2)   (SMEM scalar)
    # layer1: Linear(6, 11) on the MXU (exact-f32; K=6 so HIGHEST is ~free).
    z = jnp.dot(w1_ref[...], x_ref[...],
                preferred_element_type=jnp.float32,
                precision=jax.lax.Precision.HIGHEST)               # (11, TB)
    # Sigmoid as a single EUP tanh: sigmoid(a) = 0.5*(tanh(a/2)+1); the 0.5
    # scales and the +1 offset are folded into the parameters in the wrapper.
    t = jnp.tanh(z + b1_ref[...])                                  # (11, TB)
    # layer4: Linear(11, 1) as VPU broadcast-mul + sublane (XLU) reduction;
    # avoids an N=1 MXU matmul and keeps the (1, TB) store lane-dense.
    o_ref[...] = jnp.sum(t * w2_ref[...], axis=0, keepdims=True) + b2_ref[0, 0]


def bpnn_wnn_forward(x, w1, b1, w2, b2, *, block_b=32768):
    """Forward pass of BPNNModel_WNN.

    x:  [B, 6] float
    w1: [11, 6], b1: [11]   (torch layer1 Linear parameters, (out, in) layout)
    w2: [1, 11], b2: [1]    (torch layer4 Linear parameters)
    returns [B, 1] float32
    """
    B = x.shape[0]
    f32 = jnp.float32

    # ---- batch (lane) tile ------------------------------------------------
    # Multiple of 128 (unmasked vst), large enough to be HBM-bound rather than
    # per-step-overhead bound, capped at 128K columns (VMEM budget) and capped
    # so the grid has >= 2 steps for v7x's two TensorCores.
    tb = _round_up(max(128, int(block_b)), 128)
    tb = min(tb, 131072)
    tb = min(tb, _round_up((B + 1) // 2, 128))
    tb = max(tb, 128)
    grid_b = pl.cdiv(B, tb)

    # ---- parameter re-folding (tiny, done once in the wrapper) -------------
    # sigmoid(W1 x + b1) = 0.5*(tanh((0.5 W1) x + 0.5 b1) + 1)
    # o = w2 . h + b2    = (0.5 w2) . tanh(...) + (b2 + 0.5 * sum(w2))
    w1h = 0.5 * jnp.asarray(w1, f32)                          # (11, 6)
    b1h = 0.5 * jnp.asarray(b1, f32).reshape(HID, 1)          # (11, 1)
    w2v = jnp.asarray(w2, f32).reshape(OUT, HID)              # (1, 11)
    w2h = 0.5 * w2v.reshape(HID, 1)                           # (11, 1)
    b2e = jnp.asarray(b2, f32).reshape(1, 1) + 0.5 * jnp.sum(w2v)  # (1, 1)

    # Batch -> lane axis.  No jnp.pad (Pallas masks the ragged tail block);
    # allow_input_fusion lets XLA fuse this transpose/cast into the pallas
    # operand instead of materializing a second (6, B) HBM array.
    xt = jnp.asarray(x, f32).T                                # (6, B)

    cost = pl.CostEstimate(
        flops=2 * (IN + OUT) * HID * B,
        transcendentals=HID * B,
        bytes_accessed=4 * ((IN + OUT) * B + HID * (IN + 2) + 1),
    )

    out = pl.pallas_call(
        _wnn_kernel,
        out_shape=jax.ShapeDtypeStruct((OUT, B), jnp.float32),
        grid=(grid_b,),
        in_specs=[
            pl.BlockSpec((IN, tb), lambda i: (0, i)),            # x tile, lane-dense
            pl.BlockSpec((HID, IN), lambda i: (0, 0)),           # 0.5*W1, resident
            pl.BlockSpec((HID, 1), lambda i: (0, 0)),            # 0.5*b1, resident
            pl.BlockSpec((HID, 1), lambda i: (0, 0)),            # 0.5*w2, resident
            pl.BlockSpec(memory_space=pltpu.MemorySpace.SMEM),   # b2_eff scalar
        ],
        out_specs=pl.BlockSpec((OUT, tb), lambda i: (0, i)),     # lane-dense store
        compiler_params=pltpu.CompilerParams(
            dimension_semantics=("parallel",),          # v7x: split batch over 2 TCs
            vmem_limit_bytes=32 * 1024 * 1024,          # explicit (v5e default is 16 MiB)
            allow_input_fusion=[True, False, False, False, False],
        ),
        cost_estimate=cost,
    )(xt, w1h, b1h, w2h, b2e)

    return out.T                                               # (B, 1)


def _reference(x, w1, b1, w2, b2):
    h = jax.nn.sigmoid(x @ w1.T + b1)
    return h @ w2.T + b2


if __name__ == "__main__":
    key = jax.random.PRNGKey(0)
    kx, k1, kb1, k2, kb2 = jax.random.split(key, 5)

    B = 300   # not a multiple of 128 -> exercises the masked ragged-tail block

    # Deterministic synthetic parameters in torch nn.Linear layout.
    x = jax.random.normal(kx, (B, IN), dtype=jnp.float32)
    lim1 = 1.0 / jnp.sqrt(jnp.float32(IN))
    w1 = jax.random.uniform(k1, (HID, IN), jnp.float32, -lim1, lim1)
    b1 = jax.random.uniform(kb1, (HID,), jnp.float32, -lim1, lim1)
    lim2 = 1.0 / jnp.sqrt(jnp.float32(HID))
    w2 = jax.random.uniform(k2, (OUT, HID), jnp.float32, -lim2, lim2)
    b2 = jax.random.uniform(kb2, (OUT,), jnp.float32, -lim2, lim2)

    # jit so the wrapper-side transpose/cast can actually fuse into the
    # pallas operand (allow_input_fusion).  With B=300 the tile logic gives
    # tb=256, grid=(2,): two pipelined steps + a ragged (masked) tail.
    fwd = jax.jit(bpnn_wnn_forward)
    out = jax.block_until_ready(fwd(x, w1, b1, w2, b2))

    ref = _reference(x, w1, b1, w2, b2)
    assert out.shape == (B, OUT), out.shape
    max_err = float(jnp.max(jnp.abs(out - ref)))
    assert jnp.allclose(out, ref, atol=1e-5, rtol=1e-5), max_err

    print("KERNEL_OK")
</pallas_src>

<mosaic_0001>
module attributes {stable_mosaic.version = 11 : i64} {
  func.func @_wnn_kernel(%arg0: i32, %arg1: memref<6x256xf32, #tpu.memory_space<vmem>>, %arg2: memref<11x6xf32, #tpu.memory_space<vmem>>, %arg3: memref<11x1xf32, #tpu.memory_space<vmem>>, %arg4: memref<11x1xf32, #tpu.memory_space<vmem>>, %arg5: memref<1x1xf32, #tpu.memory_space<smem>>, %arg6: memref<1x256xf32, #tpu.memory_space<vmem>>) attributes {dimension_semantics = [#tpu.dimension_semantics<parallel>], iteration_bounds = array<i64: 2>, scalar_prefetch = 0 : i64, scratch_operands = 0 : i64, tpu.core_type = #tpu.core_type<tc>, window_params = [{transform_indices = @transform_0, window_bounds = array<i64: 6, 256>}, {pipeline_mode = #tpu.pipeline_mode<synchronous>, transform_indices = @transform_1, window_bounds = array<i64: 11, 6>}, {pipeline_mode = #tpu.pipeline_mode<synchronous>, transform_indices = @transform_2, window_bounds = array<i64: 11, 1>}, {pipeline_mode = #tpu.pipeline_mode<synchronous>, transform_indices = @transform_3, window_bounds = array<i64: 11, 1>}, {transform_indices = @transform_4, window_bounds = array<i64: 1, 1>}, {transform_indices = @transform_5, window_bounds = array<i64: 1, 256>}]} {
    %c0 = arith.constant 0 : index
    %c0_0 = arith.constant 0 : index
    %0 = vector.load %arg2[%c0, %c0_0] : memref<11x6xf32, #tpu.memory_space<vmem>>, vector<11x6xf32>
    %c0_1 = arith.constant 0 : index
    %c0_2 = arith.constant 0 : index
    %1 = vector.load %arg1[%c0_1, %c0_2] : memref<6x256xf32, #tpu.memory_space<vmem>>, vector<6x256xf32>
    %cst = arith.constant dense<0.000000e+00> : vector<11x256xf32>
    %2 = tpu.matmul %0, %1, %cst {dimension_numbers = #tpu.dot_dimension_numbers<[1], [0], [0], [1], [0, 0, 1, 1], [], []>, precision = #tpu.contract_precision<fp32>} : vector<11x6xf32>, vector<6x256xf32>, vector<11x256xf32> -> vector<11x256xf32>
    %c0_3 = arith.constant 0 : index
    %c0_4 = arith.constant 0 : index
    %3 = vector.load %arg3[%c0_3, %c0_4] : memref<11x1xf32, #tpu.memory_space<vmem>>, vector<11x1xf32>
    %4 = vector.broadcast %3 : vector<11x1xf32> to vector<11x256xf32>
    %5 = arith.addf %2, %4 : vector<11x256xf32>
    %6 = math.tanh %5 : vector<11x256xf32>
    %c0_5 = arith.constant 0 : index
    %c0_6 = arith.constant 0 : index
    %7 = vector.load %arg4[%c0_5, %c0_6] : memref<11x1xf32, #tpu.memory_space<vmem>>, vector<11x1xf32>
    %8 = vector.broadcast %7 : vector<11x1xf32> to vector<11x256xf32>
    %9 = arith.mulf %6, %8 : vector<11x256xf32>
    %cst_7 = arith.constant dense<0.000000e+00> : vector<256xf32>
    %10 = vector.multi_reduction <add>, %9, %cst_7 [0] : vector<11x256xf32> to vector<256xf32>
    %11 = vector.shape_cast %10 : vector<256xf32> to vector<1x256xf32>
    %c0_8 = arith.constant 0 : index
    %c0_9 = arith.constant 0 : index
    %12 = memref.load %arg5[%c0_8, %c0_9] : memref<1x1xf32, #tpu.memory_space<smem>>
    %13 = vector.broadcast %12 : f32 to vector<1x256xf32>
    %14 = arith.addf %11, %13 : vector<1x256xf32>
    %c0_10 = arith.constant 0 : index
    %c0_11 = arith.constant 0 : index
    %15 = vector.load %arg6[%c0_10, %c0_11] : memref<1x256xf32, #tpu.memory_space<vmem>>, vector<1x256xf32>
    tpu.vector_store %arg6[%c0_10, %c0_11], %14 {strides = array<i32>} : memref<1x256xf32, #tpu.memory_space<vmem>>, vector<1x256xf32>,
    return
  }
  func.func @transform_0(%arg0: i32) -> (i32, i32) {
    %c0_i32 = arith.constant 0 : i32
    %c0_i32_0 = arith.constant 0 : i32
    return %c0_i32, %arg0 : i32, i32
  }
  func.func @transform_1(%arg0: i32) -> (i32, i32) {
    %c0_i32 = arith.constant 0 : i32
    %c0_i32_0 = arith.constant 0 : i32
    %c0_i32_1 = arith.constant 0 : i32
    return %c0_i32, %c0_i32_0 : i32, i32
  }
  func.func @transform_2(%arg0: i32) -> (i32, i32) {
    %c0_i32 = arith.constant 0 : i32
    %c0_i32_0 = arith.constant 0 : i32
    %c0_i32_1 = arith.constant 0 : i32
    return %c0_i32, %c0_i32_0 : i32, i32
  }
  func.func @transform_3(%arg0: i32) -> (i32, i32) {
    %c0_i32 = arith.constant 0 : i32
    %c0_i32_0 = arith.constant 0 : i32
    %c0_i32_1 = arith.constant 0 : i32
    return %c0_i32, %c0_i32_0 : i32, i32
  }
  func.func @transform_4(%arg0: i32) -> (i32, i32) {
    %c0_i32 = arith.constant 0 : i32
    %c0_i32_0 = arith.constant 0 : i32
    %c0_i32_1 = arith.constant 0 : i32
    return %c0_i32, %c0_i32_0 : i32, i32
  }
  func.func @transform_5(%arg0: i32) -> (i32, i32) {
    %c0_i32 = arith.constant 0 : i32
    %c0_i32_0 = arith.constant 0 : i32
    return %c0_i32, %arg0 : i32, i32
  }
}

</mosaic_0001>

<llo_original>
// kernel: bpnn_wnn_forward.2
$region0: #{bpnn_wnn_forward.2}
  #allocation0 [shape = 'u32[]', space=smem, size = 0x4, offset = 0x4, fixed_abs, tag = 'smem constant byte address 0x4 - core index']
  #allocation1 [shape = 'u32[72,128]{1,0:T(1,128)}', space=vmem, size = 0x9000, scoped, tag = 'internal scratch']
  #allocation2 [shape = 'f32[1,1]{1,0:T(1,128)S(6)}', space=smem, size = 0x200, scoped, tag = 'scoped memory for bpnn_wnn_forward.2']
  %s0 = inlined_call_operand.vmem [shape: f32[11,6], index: 0, kind: input, shape index: {}]
  %s1 = inlined_call_operand.vmem [shape: f32[11,1], index: 1, kind: input, shape index: {}]
  %s2 = inlined_call_operand.vmem [shape: f32[11,1], index: 2, kind: input, shape index: {}]
  %s3 = inlined_call_operand.<no memory space> [shape: f32[1,1], index: 3, kind: input, shape index: {}]
  %s4 = inlined_call_operand.vmem [shape: f32[300,6], index: 4, kind: input, shape index: {}]
  %s5 = inlined_call_operand.hbm [shape: f32[1,300], index: 5, kind: output, shape index: {}]
  %s6 = sld [smem:[#allocation0]]
  $region53: #{bpnn_wnn_forward.2} parent=0
    _
  %s8 = ssub.s32 1, %s6
  %s9 = scalar_select 0, %s8, %s6
  %10 = sst [smem:[#allocation2]] %s3
  $region1: #{bpnn_wnn_forward.2} parent=0
    #allocation3 [shape = 'u8[2048]{0}', space=vmem, size = 0x800, scoped, tag = 'output window, operand 0']
    #allocation4 [shape = 's32[2]{0}', space=sflag, size = 0x8, scoped, tag = 'scoped memory for bpnn_wnn_forward.2']
    %11 = vsyncpa [#allocation4], 0
    %s12 = scalar_lea.sflag [#allocation4], 1
    %13 = vsyncpa %s12, 0
    loop: start=0, step=1, limit=4
    $region2: #{bpnn_wnn_forward.2} parent=1 // loop_pre_header
      _
    $region3: #{bpnn_wnn_forward.2} parent=1 // loop_header
      %s15 = sphi 0, %s19
      %p16 = scmp.ge.s32.totalorder %s15, 4
      %s25 = sphi 0, %s27
      %s28 = sphi 0, %s25
      %s29 = sphi 0, %s28
      %s45 = sphi 0, %s29
      %s49 = sphi 0, %s49
      %s51 = sphi 0, %s49
      %s52 = sphi 0, %s51
      %s66 = sphi 0, %s52
      %s70 = sphi 0, %s70
      %s72 = sphi 0, %s70
      %s73 = sphi 0, %s72
      %s87 = sphi 0, %s73
      %s91 = sphi 0, %s91
      %s93 = sphi 0, %s91
      %s94 = sphi 0, %s93
      %s108 = sphi 0, %s94
      %s112 = sphi 0, %s112
      %s114 = sphi 0, %s112
      %s115 = sphi 0, %s114
      %s129 = sphi 0, %s115
      %s135 = sphi 0, %s137
      %s138 = sphi 0, %s135
      %s139 = sphi 0, %s138
      %s155 = sphi 0, %s139
    $region4: #{bpnn_wnn_forward.2} parent=1 // loop_header_branch
      %18 = sbr.rel (%p16) target = $region8
    $region5: #{bpnn_wnn_forward.2} parent=1 // loop_body
      %s20 = ssub.s32 %s15, 1
      %s21 = ssub.s32 %s15, 2
      %s22 = sadd.s32 %s15, 1
      %s23 = ssub.s32 %s15, %s22
      %p24 = scmp.eq.s32.totalorder %s23, 0
      %s26 = sadd.s32 %s25, 1
      %s27 = scalar_select %p24, %s25, %s26
      %p30 = pneg %p24
      %p31 = scmp.eq.s32.totalorder %s15, 1
      %p32 = por %p30, %p31
      %p33 = scmp.ne.s32.totalorder %s25, %s28
      %p34 = scmp.eq.s32.totalorder %s15, 0
      %p35 = por %p33, %p34
      %p36 = scmp.ne.s32.totalorder %s25, %s28
      %p37 = scmp.eq.s32.totalorder %s20, 1
      %p38 = por %p36, %p37
      %p39 = scmp.ne.s32.totalorder %s28, %s29
      %p40 = scmp.eq.s32.totalorder %s20, 0
      %p41 = por %p39, %p40
      %p42 = scmp.ne.s32.totalorder %s28, %s29
      %p43 = scmp.eq.s32.totalorder %s21, 1
      %p44 = por %p42, %p43
      %p46 = scmp.ne.s32.totalorder %s29, %s45
      %p47 = scmp.eq.s32.totalorder %s21, 0
      %p48 = por %p46, %p47
      %s50 = sadd.s32 %s49, 1
      %p53 = scmp.eq.s32.totalorder %s15, 1
      %p54 = scmp.ne.s32.totalorder %s49, %s51
      %p55 = scmp.eq.s32.totalorder %s15, 0
      %p56 = por %p54, %p55
      %p57 = scmp.ne.s32.totalorder %s49, %s51
      %p58 = scmp.eq.s32.totalorder %s20, 1
      %p59 = por %p57, %p58
      %p60 = scmp.ne.s32.totalorder %s51, %s52
      %p61 = scmp.eq.s32.totalorder %s20, 0
      %p62 = por %p60, %p61
      %p63 = scmp.ne.s32.totalorder %s51, %s52
      %p64 = scmp.eq.s32.totalorder %s21, 1
      %p65 = por %p63, %p64
      %p67 = scmp.ne.s32.totalorder %s52, %s66
      %p68 = scmp.eq.s32.totalorder %s21, 0
      %p69 = por %p67, %p68
      %s71 = sadd.s32 %s70, 1
      %p74 = scmp.eq.s32.totalorder %s15, 1
      %p75 = scmp.ne.s32.totalorder %s70, %s72
      %p76 = scmp.eq.s32.totalorder %s15, 0
      %p77 = por %p75, %p76
      %p78 = scmp.ne.s32.totalorder %s70, %s72
      %p79 = scmp.eq.s32.totalorder %s20, 1
      %p80 = por %p78, %p79
      %p81 = scmp.ne.s32.totalorder %s72, %s73
      %p82 = scmp.eq.s32.totalorder %s20, 0
      %p83 = por %p81, %p82
      %p84 = scmp.ne.s32.totalorder %s72, %s73
      %p85 = scmp.eq.s32.totalorder %s21, 1
      %p86 = por %p84, %p85
      %p88 = scmp.ne.s32.totalorder %s73, %s87
      %p89 = scmp.eq.s32.totalorder %s21, 0
      %p90 = por %p88, %p89
      %s92 = sadd.s32 %s91, 1
      %p95 = scmp.eq.s32.totalorder %s15, 1
      %p96 = scmp.ne.s32.totalorder %s91, %s93
      %p97 = scmp.eq.s32.totalorder %s15, 0
      %p98 = por %p96, %p97
      %p99 = scmp.ne.s32.totalorder %s91, %s93
      %p100 = scmp.eq.s32.totalorder %s20, 1
      %p101 = por %p99, %p100
      %p102 = scmp.ne.s32.totalorder %s93, %s94
      %p103 = scmp.eq.s32.totalorder %s20, 0
      %p104 = por %p102, %p103
      %p105 = scmp.ne.s32.totalorder %s93, %s94
      %p106 = scmp.eq.s32.totalorder %s21, 1
      %p107 = por %p105, %p106
      %p109 = scmp.ne.s32.totalorder %s94, %s108
      %p110 = scmp.eq.s32.totalorder %s21, 0
      %p111 = por %p109, %p110
      %s113 = sadd.s32 %s112, 1
      %p116 = scmp.eq.s32.totalorder %s15, 1
      %p117 = scmp.ne.s32.totalorder %s112, %s114
      %p118 = scmp.eq.s32.totalorder %s15, 0
      %p119 = por %p117, %p118
      %p120 = scmp.ne.s32.totalorder %s112, %s114
      %p121 = scmp.eq.s32.totalorder %s20, 1
      %p122 = por %p120, %p121
      %p123 = scmp.ne.s32.totalorder %s114, %s115
      %p124 = scmp.eq.s32.totalorder %s20, 0
      %p125 = por %p123, %p124
      %p126 = scmp.ne.s32.totalorder %s114, %s115
      %p127 = scmp.eq.s32.totalorder %s21, 1
      %p128 = por %p126, %p127
      %p130 = scmp.ne.s32.totalorder %s115, %s129
      %p131 = scmp.eq.s32.totalorder %s21, 0
      %p132 = por %p130, %p131
      %s133 = ssub.s32 %s15, %s22
      %p134 = scmp.eq.s32.totalorder %s133, 0
      %s136 = sadd.s32 %s135, 1
      %s137 = scalar_select %p134, %s135, %s136
      %p140 = pneg %p134
      %p141 = scmp.eq.s32.totalorder %s15, 1
      %p142 = por %p140, %p141
      %p143 = scmp.ne.s32.totalorder %s135, %s138
      %p144 = scmp.eq.s32.totalorder %s15, 0
      %p145 = por %p143, %p144
      %p146 = scmp.ne.s32.totalorder %s135, %s138
      %p147 = scmp.eq.s32.totalorder %s20, 1
      %p148 = por %p146, %p147
      %p149 = scmp.ne.s32.totalorder %s138, %s139
      %p150 = scmp.eq.s32.totalorder %s20, 0
      %p151 = por %p149, %p150
      %p152 = scmp.ne.s32.totalorder %s138, %s139
      %p153 = scmp.eq.s32.totalorder %s21, 1
      %p154 = por %p152, %p153
      %p156 = scmp.ne.s32.totalorder %s139, %s155
      %p157 = scmp.eq.s32.totalorder %s21, 0
      %p158 = por %p156, %p157
      %p159 = scmp.le.s32.totalorder 1, %s15
      %p160 = scmp.lt.s32.totalorder %s15, 3
      %p161 = pnand %p159, %p160
      %p162 = pneg %p161
      // Predicated region
      $region9: #{bpnn_wnn_forward.2} parent=5 // pred_check
        _
      $region10: #{bpnn_wnn_forward.2} parent=5 // pred_check_branch
        %164 = sbr.rel (%p161) target = $region12
      $region11: #{bpnn_wnn_forward.2} parent=5 // pred_region
        %s165 = ssub.s32 %s15, 1
        // Predicated region
        $region13: #{bpnn_wnn_forward.2} parent=11 // pred_check
          %p166 = pneg %p62
        $region14: #{bpnn_wnn_forward.2} parent=11 // pred_check_branch
          %168 = sbr.rel (%p166) target = $region16
        $region15: #{bpnn_wnn_forward.2} parent=11 // pred_region
          _
        $region16: #{bpnn_wnn_forward.2} parent=11 // pred_fallthru
          _
        // Predicated region
        $region17: #{bpnn_wnn_forward.2} parent=11 // pred_check
          %p169 = pneg %p83
        $region18: #{bpnn_wnn_forward.2} parent=11 // pred_check_branch
          %171 = sbr.rel (%p169) target = $region20
        $region19: #{bpnn_wnn_forward.2} parent=11 // pred_region
          _
        $region20: #{bpnn_wnn_forward.2} parent=11 // pred_fallthru
          _
        // Predicated region
        $region21: #{bpnn_wnn_forward.2} parent=11 // pred_check
          %p172 = pneg %p104
        $region22: #{bpnn_wnn_forward.2} parent=11 // pred_check_branch
          %174 = sbr.rel (%p172) target = $region24
        $region23: #{bpnn_wnn_forward.2} parent=11 // pred_region
          _
        $region24: #{bpnn_wnn_forward.2} parent=11 // pred_fallthru
          _
        // Predicated region
        $region25: #{bpnn_wnn_forward.2} parent=11 // pred_check
          %p175 = pneg %p125
        $region26: #{bpnn_wnn_forward.2} parent=11 // pred_check_branch
          %177 = sbr.rel (%p175) target = $region28
        $region27: #{bpnn_wnn_forward.2} parent=11 // pred_region
          _
        $region28: #{bpnn_wnn_forward.2} parent=11 // pred_fallthru
          _
      $region12: #{bpnn_wnn_forward.2} parent=5 // pred_fallthru
        _
      %p178 = scmp.lt.s32.totalorder %s15, 2
      // Predicated region
      $region29: #{bpnn_wnn_forward.2} parent=5 // pred_check
        %p179 = pneg %p178
      $region30: #{bpnn_wnn_forward.2} parent=5 // pred_check_branch
        %181 = sbr.rel (%p179) target = $region32
      $region31: #{bpnn_wnn_forward.2} parent=5 // pred_region
        // Predicated region
        $region33: #{bpnn_wnn_forward.2} parent=31 // pred_check
          %p182 = pneg %p35
        $region34: #{bpnn_wnn_forward.2} parent=31 // pred_check_branch
          %184 = sbr.rel (%p182) target = $region36
        $region35: #{bpnn_wnn_forward.2} parent=31 // pred_region
          %s185 = smul.u32 2, %s15
          %s186 = ssub.s32 3, %s185
          %p187 = scmp.lt.s32.totalorder %s186, 2
          %s188 = scalar_select %p187, %s186, 2
          %s189 = smul.u32 8, %s188
          %p190 = scmp.lt.s32.totalorder %s185, 2
          %s191 = scalar_select %p190, %s185, 2
          %s192 = smul.addr %s191, 8
          %s193 = scalar_lea.vmem %s4, %s192
          %s194 = smul.u32 2, %s15
          %s195 = ssub.s32 3, %s194
          %p196 = scmp.lt.s32.totalorder %s195, 2
          %s197 = scalar_select %p196, %s195, 2
          %s198 = smul.u32 8, %s197
        $region36: #{bpnn_wnn_forward.2} parent=31 // pred_fallthru
          _
      $region32: #{bpnn_wnn_forward.2} parent=5 // pred_fallthru
        _
      %p199 = scmp.le.s32.totalorder 1, %s15
      %p200 = scmp.lt.s32.totalorder %s15, 3
      %p201 = pnand %p199, %p200
      %p202 = pneg %p201
      // Predicated region
      $region37: #{bpnn_wnn_forward.2} parent=5 // pred_check
        _
      $region38: #{bpnn_wnn_forward.2} parent=5 // pred_check_branch
        %204 = sbr.rel (%p201) target = $region40
      $region39: #{bpnn_wnn_forward.2} parent=5 // pred_region
        #allocation5 [shape = 'u8[8192]{0}', space=vmem, size = 0x2000, dematerialized = true, scoped, tag = 'FusionAdapter Buffer %fusion.1 = f32[6,300]{1,0:T(8,128)} fusion(%param_4.1), kind=kLoop, calls=%fused_computation.1.clone, metadata={op_name="jit(bpnn_wnn_forward)/transpose" stack_frame_id=15}']
        %s205 = ssub.s32 %s15, 1
        %s206 = smul.u32 2, %s20
        %s207 = ssub.s32 3, %s206
        %p208 = scmp.lt.s32.totalorder %s207, 2
        %s209 = scalar_select %p208, %s207, 2
        %s210 = smul.u32 8, %s209
        %p211 = scmp.lt.s32.totalorder %s206, 2
        %s212 = scalar_select %p211, %s206, 2
        %s213 = smul.addr %s212, 8
        %s214 = scalar_lea.vmem %s4, %s213
        %p215 = pneg %p41
        %p216 = pneg %p38
        %p217 = pneg %p62
        %p218 = pneg %p59
        %p219 = pneg %p83
        %p220 = pneg %p80
        %p221 = pneg %p104
        %p222 = pneg %p101
        %p223 = pneg %p125
        %p224 = pneg %p122
        %p225 = pneg %p151
        %p226 = pneg %p148
        %s227 = sand.u32 %s138, 1
        %s228 = scalar_lea.sflag [#allocation4], %s227
        %s229 = sand.u32 %s138, 1
        %s230 = smul.addr %s229, 2
        %s231 = scalar_lea.vmem [#allocation3], %s230
        %s232 = smul.u32 2, %s20
        %s233 = ssub.s32 3, %s232
        %p234 = scmp.lt.s32.totalorder %s233, 2
        %s235 = scalar_select %p234, %s233, 2
        %s236 = smul.u32 8, %s235
        %p237 = scmp.lt.s32.totalorder %s232, 2
        %s238 = scalar_select %p237, %s232, 2
        %s239 = smul.addr %s238, 8
        %s240 = scalar_lea.vmem %s4, %s239
        %s241 = smul.u32 2, %s20
        %s242 = ssub.s32 3, %s241
        %p243 = scmp.lt.s32.totalorder %s242, 2
        %s244 = scalar_select %p243, %s242, 2
        %s245 = smul.u32 8, %s244
        %s246 = smul.u32 2, %s20
        %s247 = ssub.s32 3, %s246
        %p248 = scmp.lt.s32.totalorder %s247, 2
        %s249 = scalar_select %p248, %s247, 2
        %v250 = vld [vmem:[%s240] sm:$0x3f]
        %s252 = ssub.s32 256, 1
        %253 = vst [vmem:[#allocation5] sm:%s252] %v250
        %s254 = scalar_lea.vmem %s240, 8
        %s255 = sadd.s32 %s241, 1
        %s256 = ssub.s32 2, %s255
        %p257 = scmp.lt.s32.totalorder %s256, 0
        %s258 = scalar_select %p257, 0, 255
        %s259 = sand.u32 63, %s258
        %v260 = vld [vmem:[%s254] sm:%s259]
        %s261 = scalar_lea.vmem [#allocation5], 8
        %s263 = ssub.s32 256, 1
        %264 = vst [vmem:[%s261] sm:%s263] %v260
        %v265 = vld [vmem:[%s0] sm:$0xff]
        %v266 = vld [vmem:[%s0 + $0x8] sm:$0x7]
        %v267 = vld [vmem:[#allocation5] sm:$0x3f]
        %v268 = vld [vmem:[#allocation5 + $0x8] sm:$0x3f]
        %v269 = vld [vmem:[%s1] sm:$0xff]
        %v270 = vld [vmem:[%s1 + $0x8] sm:$0x7]
        %272 = vset.pattern.permute.xlu0 0
        %273 = vperm.xlu0 %272, %v269
        %v274 = vpop.permute.xlu0 %273
        %277 = vset.pattern.permute.xlu0 0
        %278 = vperm.xlu0 %277, %v270
        %v279 = vpop.permute.xlu0 %278
        %vm281 = vcmask 48128
        %v283 = vsel %vm281, %v265, 0
        %v286 = vsel %vm281, %v266, 0
        %vm288 = vcmask 1045504
        %v290 = vsel %vm288, %v267, 0
        %v293 = vsel %vm288, %v268, 0
        %295 = vmatpush.msra.mxu0 0.0
        %296 = vmatpush.msra.mxu0 0.0
        %297 = vmatpush.msra.mxu0 0.0
        %298 = vmatpush.msra.mxu0 0.0
        %299 = vmatpush.msra.mxu0 0.0
        %300 = vmatpush.msra.mxu0 0.0
        %301 = vmatpush.msra.mxu0 0.0
        %302 = vmatpush.msra.mxu0 0.0
        %303 = vmatpush.msra.mxu0 0.0
        %304 = vmatpush.msra.mxu0 0.0
        %305 = vmatpush.msra.mxu0 0.0
        %306 = vmatpush.msra.mxu0 0.0
        %307 = vmatpush.msra.mxu0 0.0
        %308 = vmatpush.msra.mxu0 0.0
        %309 = vmatpush.msra.mxu0 0.0
        %v310 = vand.u32 %v290, 4294901760
        %311 = vmatpush.msra.mxu0 %v310
        %v312 = vand.u32 %v283, 4294901760
        %v313 = vsub.f32 %v283, %v312
        %v314 = vand.u32 %v313, 4294901760
        %v315 = vsub.f32 %v313, %v314
        %v316 = vand.u32 %v315, 4294901760
        %317 = vmatmul.f32.gmra.mxu0 %v316
        %v318 = vpop.f32.mrf.mxu0
        %v319 = vadd.f32 %v274, %v318
        %v320 = vand.u32 %v286, 4294901760
        %v321 = vsub.f32 %v286, %v320
        %v322 = vand.u32 %v321, 4294901760
        %v323 = vsub.f32 %v321, %v322
        %v324 = vand.u32 %v323, 4294901760
        %325 = vmatmul.f32.gmra.mxu0 %v324
        %v326 = vpop.f32.mrf.mxu0
        %v327 = vadd.f32 %v279, %v326
        %328 = vdwg.mxu0
        %329 = vmatpush.msra.mxu0 0.0
        %330 = vmatpush.msra.mxu0 0.0
        %331 = vmatpush.msra.mxu0 0.0
        %332 = vmatpush.msra.mxu0 0.0
        %333 = vmatpush.msra.mxu0 0.0
        %334 = vmatpush.msra.mxu0 0.0
        %335 = vmatpush.msra.mxu0 0.0
        %336 = vmatpush.msra.mxu0 0.0
        %337 = vmatpush.msra.mxu0 0.0
        %338 = vmatpush.msra.mxu0 0.0
        %339 = vmatpush.msra.mxu0 0.0
        %340 = vmatpush.msra.mxu0 0.0
        %341 = vmatpush.msra.mxu0 0.0
        %342 = vmatpush.msra.mxu0 0.0
        %343 = vmatpush.msra.mxu0 0.0
        %v344 = vand.u32 %v290, 4294901760
        %v345 = vsub.f32 %v290, %v344
        %v346 = vand.u32 %v345, 4294901760
        %v347 = vsub.f32 %v345, %v346
        %v348 = vand.u32 %v347, 4294901760
        %349 = vmatpush.msra.mxu0 %v348
        %v350 = vand.u32 %v283, 4294901760
        %351 = vmatmul.f32.gmra.mxu0 %v350
        %v352 = vpop.f32.mrf.mxu0
        %v353 = vadd.f32 %v319, %v352
        %v354 = vand.u32 %v286, 4294901760
        %355 = vmatmul.f32.gmra.mxu0 %v354
        %v356 = vpop.f32.mrf.mxu0
        %v357 = vadd.f32 %v327, %v356
        %358 = vdwg.mxu0
        %359 = vmatpush.msra.mxu0 0.0
        %360 = vmatpush.msra.mxu0 0.0
        %361 = vmatpush.msra.mxu0 0.0
        %362 = vmatpush.msra.mxu0 0.0
        %363 = vmatpush.msra.mxu0 0.0
        %364 = vmatpush.msra.mxu0 0.0
        %365 = vmatpush.msra.mxu0 0.0
        %366 = vmatpush.msra.mxu0 0.0
        %367 = vmatpush.msra.mxu0 0.0
        %368 = vmatpush.msra.mxu0 0.0
        %369 = vmatpush.msra.mxu0 0.0
        %370 = vmatpush.msra.mxu0 0.0
        %371 = vmatpush.msra.mxu0 0.0
        %372 = vmatpush.msra.mxu0 0.0
        %373 = vmatpush.msra.mxu0 0.0
        %v374 = vand.u32 %v290, 4294901760
        %v375 = vsub.f32 %v290, %v374
        %376 = vmatpush.msra.mxu0 %v375
        %v377 = vand.u32 %v283, 4294901760
        %v378 = vsub.f32 %v283, %v377
        %379 = vmatmul.f32.gmra.mxu0 %v378
        %v380 = vpop.f32.mrf.mxu0
        %v381 = vadd.f32 %v353, %v380
        %v382 = vand.u32 %v286, 4294901760
        %v383 = vsub.f32 %v286, %v382
        %384 = vmatmul.f32.gmra.mxu0 %v383
        %v385 = vpop.f32.mrf.mxu0
        %v386 = vadd.f32 %v357, %v385
        %387 = vdwg.mxu0
        %388 = vmatpush.msra.mxu0 0.0
        %389 = vmatpush.msra.mxu0 0.0
        %390 = vmatpush.msra.mxu0 0.0
        %391 = vmatpush.msra.mxu0 0.0
        %392 = vmatpush.msra.mxu0 0.0
        %393 = vmatpush.msra.mxu0 0.0
        %394 = vmatpush.msra.mxu0 0.0
        %395 = vmatpush.msra.mxu0 0.0
        %396 = vmatpush.msra.mxu0 0.0
        %397 = vmatpush.msra.mxu0 0.0
        %398 = vmatpush.msra.mxu0 0.0
        %399 = vmatpush.msra.mxu0 0.0
        %400 = vmatpush.msra.mxu0 0.0
        %401 = vmatpush.msra.mxu0 0.0
        %402 = vmatpush.msra.mxu0 0.0
        %v403 = vand.u32 %v290, 4294901760
        %404 = vmatpush.msra.mxu0 %v403
        %v405 = vand.u32 %v283, 4294901760
        %v406 = vsub.f32 %v283, %v405
        %v407 = vand.u32 %v406, 4294901760
        %408 = vmatmul.f32.gmra.mxu0 %v407
        %v409 = vpop.f32.mrf.mxu0
        %v410 = vadd.f32 %v381, %v409
        %v411 = vand.u32 %v286, 4294901760
        %v412 = vsub.f32 %v286, %v411
        %v413 = vand.u32 %v412, 4294901760
        %414 = vmatmul.f32.gmra.mxu0 %v413
        %v415 = vpop.f32.mrf.mxu0
        %v416 = vadd.f32 %v386, %v415
        %417 = vdwg.mxu0
        %418 = vmatpush.msra.mxu0 0.0
        %419 = vmatpush.msra.mxu0 0.0
        %420 = vmatpush.msra.mxu0 0.0
        %421 = vmatpush.msra.mxu0 0.0
        %422 = vmatpush.msra.mxu0 0.0
        %423 = vmatpush.msra.mxu0 0.0
        %424 = vmatpush.msra.mxu0 0.0
        %425 = vmatpush.msra.mxu0 0.0
        %426 = vmatpush.msra.mxu0 0.0
        %427 = vmatpush.msra.mxu0 0.0
        %428 = vmatpush.msra.mxu0 0.0
        %429 = vmatpush.msra.mxu0 0.0
        %430 = vmatpush.msra.mxu0 0.0
        %431 = vmatpush.msra.mxu0 0.0
        %432 = vmatpush.msra.mxu0 0.0
        %v433 = vand.u32 %v290, 4294901760
        %v434 = vsub.f32 %v290, %v433
        %v435 = vand.u32 %v434, 4294901760
        %436 = vmatpush.msra.mxu0 %v435
        %v437 = vand.u32 %v283, 4294901760
        %438 = vmatmul.f32.gmra.mxu0 %v437
        %v439 = vpop.f32.mrf.mxu0
        %v440 = vadd.f32 %v410, %v439
        %v441 = vand.u32 %v286, 4294901760
        %442 = vmatmul.f32.gmra.mxu0 %v441
        %v443 = vpop.f32.mrf.mxu0
        %v444 = vadd.f32 %v416, %v443
        %445 = vdwg.mxu0
        %446 = vmatpush.msra.mxu0 0.0
        %447 = vmatpush.msra.mxu0 0.0
        %448 = vmatpush.msra.mxu0 0.0
        %449 = vmatpush.msra.mxu0 0.0
        %450 = vmatpush.msra.mxu0 0.0
        %451 = vmatpush.msra.mxu0 0.0
        %452 = vmatpush.msra.mxu0 0.0
        %453 = vmatpush.msra.mxu0 0.0
        %454 = vmatpush.msra.mxu0 0.0
        %455 = vmatpush.msra.mxu0 0.0
        %456 = vmatpush.msra.mxu0 0.0
        %457 = vmatpush.msra.mxu0 0.0
        %458 = vmatpush.msra.mxu0 0.0
        %459 = vmatpush.msra.mxu0 0.0
        %460 = vmatpush.msra.mxu0 0.0
        %v461 = vand.u32 %v290, 4294901760
        %462 = vmatpush.msra.mxu0 %v461
        %v463 = vand.u32 %v283, 4294901760
        %464 = vmatmul.f32.gmra.mxu0 %v463
        %v465 = vpop.f32.mrf.mxu0
        %v466 = vadd.f32 %v440, %v465
        %v467 = vand.u32 %v286, 4294901760
        %468 = vmatmul.f32.gmra.mxu0 %v467
        %v469 = vpop.f32.mrf.mxu0
        %v470 = vadd.f32 %v444, %v469
        %471 = vdwg.mxu0
        %472 = vmatpush.msra.mxu0 0.0
        %473 = vmatpush.msra.mxu0 0.0
        %474 = vmatpush.msra.mxu0 0.0
        %475 = vmatpush.msra.mxu0 0.0
        %476 = vmatpush.msra.mxu0 0.0
        %477 = vmatpush.msra.mxu0 0.0
        %478 = vmatpush.msra.mxu0 0.0
        %479 = vmatpush.msra.mxu0 0.0
        %480 = vmatpush.msra.mxu0 0.0
        %481 = vmatpush.msra.mxu0 0.0
        %482 = vmatpush.msra.mxu0 0.0
        %483 = vmatpush.msra.mxu0 0.0
        %484 = vmatpush.msra.mxu0 0.0
        %485 = vmatpush.msra.mxu0 0.0
        %486 = vmatpush.msra.mxu0 0.0
        %v487 = vand.u32 %v293, 4294901760
        %488 = vmatpush.msra.mxu0 %v487
        %v489 = vand.u32 %v283, 4294901760
        %v490 = vsub.f32 %v283, %v489
        %v491 = vand.u32 %v490, 4294901760
        %v492 = vsub.f32 %v490, %v491
        %v493 = vand.u32 %v492, 4294901760
        %494 = vmatmul.f32.gmra.mxu0 %v493
        %v495 = vpop.f32.mrf.mxu0
        %v496 = vadd.f32 %v274, %v495
        %v497 = vand.u32 %v286, 4294901760
        %v498 = vsub.f32 %v286, %v497
        %v499 = vand.u32 %v498, 4294901760
        %v500 = vsub.f32 %v498, %v499
        %v501 = vand.u32 %v500, 4294901760
        %502 = vmatmul.f32.gmra.mxu0 %v501
        %v503 = vpop.f32.mrf.mxu0
        %v504 = vadd.f32 %v279, %v503
        %505 = vdwg.mxu0
        %506 = vmatpush.msra.mxu0 0.0
        %507 = vmatpush.msra.mxu0 0.0
        %508 = vmatpush.msra.mxu0 0.0
        %509 = vmatpush.msra.mxu0 0.0
        %510 = vmatpush.msra.mxu0 0.0
        %511 = vmatpush.msra.mxu0 0.0
        %512 = vmatpush.msra.mxu0 0.0
        %513 = vmatpush.msra.mxu0 0.0
        %514 = vmatpush.msra.mxu0 0.0
        %515 = vmatpush.msra.mxu0 0.0
        %516 = vmatpush.msra.mxu0 0.0
        %517 = vmatpush.msra.mxu0 0.0
        %518 = vmatpush.msra.mxu0 0.0
        %519 = vmatpush.msra.mxu0 0.0
        %520 = vmatpush.msra.mxu0 0.0
        %v521 = vand.u32 %v293, 4294901760
        %v522 = vsub.f32 %v293, %v521
        %v523 = vand.u32 %v522, 4294901760
        %v524 = vsub.f32 %v522, %v523
        %v525 = vand.u32 %v524, 4294901760
        %526 = vmatpush.msra.mxu0 %v525
        %v527 = vand.u32 %v283, 4294901760
        %528 = vmatmul.f32.gmra.mxu0 %v527
        %v529 = vpop.f32.mrf.mxu0
        %v530 = vadd.f32 %v496, %v529
        %v531 = vand.u32 %v286, 4294901760
        %532 = vmatmul.f32.gmra.mxu0 %v531
        %v533 = vpop.f32.mrf.mxu0
        %v534 = vadd.f32 %v504, %v533
        %535 = vdwg.mxu0
        %536 = vmatpush.msra.mxu0 0.0
        %537 = vmatpush.msra.mxu0 0.0
        %538 = vmatpush.msra.mxu0 0.0
        %539 = vmatpush.msra.mxu0 0.0
        %540 = vmatpush.msra.mxu0 0.0
        %541 = vmatpush.msra.mxu0 0.0
        %542 = vmatpush.msra.mxu0 0.0
        %543 = vmatpush.msra.mxu0 0.0
        %544 = vmatpush.msra.mxu0 0.0
        %545 = vmatpush.msra.mxu0 0.0
        %546 = vmatpush.msra.mxu0 0.0
        %547 = vmatpush.msra.mxu0 0.0
        %548 = vmatpush.msra.mxu0 0.0
        %549 = vmatpush.msra.mxu0 0.0
        %550 = vmatpush.msra.mxu0 0.0
        %v551 = vand.u32 %v293, 4294901760
        %v552 = vsub.f32 %v293, %v551
        %553 = vmatpush.msra.mxu0 %v552
        %v554 = vand.u32 %v283, 4294901760
        %v555 = vsub.f32 %v283, %v554
        %556 = vmatmul.f32.gmra.mxu0 %v555
        %v557 = vpop.f32.mrf.mxu0
        %v558 = vadd.f32 %v530, %v557
        %v559 = vand.u32 %v286, 4294901760
        %v560 = vsub.f32 %v286, %v559
        %561 = vmatmul.f32.gmra.mxu0 %v560
        %v562 = vpop.f32.mrf.mxu0
        %v563 = vadd.f32 %v534, %v562
        %564 = vdwg.mxu0
        %565 = vmatpush.msra.mxu0 0.0
        %566 = vmatpush.msra.mxu0 0.0
        %567 = vmatpush.msra.mxu0 0.0
        %568 = vmatpush.msra.mxu0 0.0
        %569 = vmatpush.msra.mxu0 0.0
        %570 = vmatpush.msra.mxu0 0.0
        %571 = vmatpush.msra.mxu0 0.0
        %572 = vmatpush.msra.mxu0 0.0
        %573 = vmatpush.msra.mxu0 0.0
        %574 = vmatpush.msra.mxu0 0.0
        %575 = vmatpush.msra.mxu0 0.0
        %576 = vmatpush.msra.mxu0 0.0
        %577 = vmatpush.msra.mxu0 0.0
        %578 = vmatpush.msra.mxu0 0.0
        %579 = vmatpush.msra.mxu0 0.0
        %v580 = vand.u32 %v293, 4294901760
        %581 = vmatpush.msra.mxu0 %v580
        %v582 = vand.u32 %v283, 4294901760
        %v583 = vsub.f32 %v283, %v582
        %v584 = vand.u32 %v583, 4294901760
        %585 = vmatmul.f32.gmra.mxu0 %v584
        %v586 = vpop.f32.mrf.mxu0
        %v587 = vadd.f32 %v558, %v586
        %v588 = vand.u32 %v286, 4294901760
        %v589 = vsub.f32 %v286, %v588
        %v590 = vand.u32 %v589, 4294901760
        %591 = vmatmul.f32.gmra.mxu0 %v590
        %v592 = vpop.f32.mrf.mxu0
        %v593 = vadd.f32 %v563, %v592
        %594 = vdwg.mxu0
        %595 = vmatpush.msra.mxu0 0.0
        %596 = vmatpush.msra.mxu0 0.0
        %597 = vmatpush.msra.mxu0 0.0
        %598 = vmatpush.msra.mxu0 0.0
        %599 = vmatpush.msra.mxu0 0.0
        %600 = vmatpush.msra.mxu0 0.0
        %601 = vmatpush.msra.mxu0 0.0
        %602 = vmatpush.msra.mxu0 0.0
        %603 = vmatpush.msra.mxu0 0.0
        %604 = vmatpush.msra.mxu0 0.0
        %605 = vmatpush.msra.mxu0 0.0
        %606 = vmatpush.msra.mxu0 0.0
        %607 = vmatpush.msra.mxu0 0.0
        %608 = vmatpush.msra.mxu0 0.0
        %609 = vmatpush.msra.mxu0 0.0
        %v610 = vand.u32 %v293, 4294901760
        %v611 = vsub.f32 %v293, %v610
        %v612 = vand.u32 %v611, 4294901760
        %613 = vmatpush.msra.mxu0 %v612
        %v614 = vand.u32 %v283, 4294901760
        %615 = vmatmul.f32.gmra.mxu0 %v614
        %v616 = vpop.f32.mrf.mxu0
        %v617 = vadd.f32 %v587, %v616
        %v618 = vand.u32 %v286, 4294901760
        %619 = vmatmul.f32.gmra.mxu0 %v618
        %v620 = vpop.f32.mrf.mxu0
        %v621 = vadd.f32 %v593, %v620
        %622 = vdwg.mxu0
        %623 = vmatpush.msra.mxu0 0.0
        %624 = vmatpush.msra.mxu0 0.0
        %625 = vmatpush.msra.mxu0 0.0
        %626 = vmatpush.msra.mxu0 0.0
        %627 = vmatpush.msra.mxu0 0.0
        %628 = vmatpush.msra.mxu0 0.0
        %629 = vmatpush.msra.mxu0 0.0
        %630 = vmatpush.msra.mxu0 0.0
        %631 = vmatpush.msra.mxu0 0.0
        %632 = vmatpush.msra.mxu0 0.0
        %633 = vmatpush.msra.mxu0 0.0
        %634 = vmatpush.msra.mxu0 0.0
        %635 = vmatpush.msra.mxu0 0.0
        %636 = vmatpush.msra.mxu0 0.0
        %637 = vmatpush.msra.mxu0 0.0
        %v638 = vand.u32 %v293, 4294901760
        %639 = vmatpush.msra.mxu0 %v638
        %v640 = vand.u32 %v283, 4294901760
        %641 = vmatmul.f32.gmra.mxu0 %v640
        %v642 = vpop.f32.mrf.mxu0
        %v643 = vadd.f32 %v617, %v642
        %v644 = vand.u32 %v286, 4294901760
        %645 = vmatmul.f32.gmra.mxu0 %v644
        %v646 = vpop.f32.mrf.mxu0
        %v647 = vadd.f32 %v621, %v646
        %648 = vdwg.mxu0
        %v649 = vtanh.pop %v466
        %v650 = vtanh.pop %v643
        %v651 = vtanh.pop %v470
        %v652 = vtanh.pop %v647
        %v653 = vld [vmem:[%s2] sm:$0xff]
        %v654 = vld [vmem:[%s2 + $0x8] sm:$0x7]
        %656 = vset.pattern.permute.xlu0 0
        %657 = vperm.xlu0 %656, %v653
        %v658 = vpop.permute.xlu0 %657
        %661 = vset.pattern.permute.xlu0 0
        %662 = vperm.xlu0 %661, %v654
        %v663 = vpop.permute.xlu0 %662
        %v665 = vmul.f32 %v649, %v658
        %v666 = vmul.f32 %v650, %v658
        %v667 = vmul.f32 %v651, %v663
        %v668 = vmul.f32 %v652, %v663
        %vm669 = vcmask 1042432
        %v670 = vsel %vm669, %v667, 0.0
        %v671 = vadd.f32 %v665, %v670
        %v672 = vrot.slane %v671, 4
        %v673 = vadd.f32 %v671, %v672
        %v674 = vrot.slane %v673, 2
        %v675 = vadd.f32 %v673, %v674
        %v676 = vrot.slane %v675, 1
        %v677 = vadd.f32 %v675, %v676
        %v678 = vsel %vm669, %v668, 0.0
        %v679 = vadd.f32 %v666, %v678
        %v680 = vrot.slane %v679, 4
        %v681 = vadd.f32 %v679, %v680
        %v682 = vrot.slane %v681, 2
        %v683 = vadd.f32 %v681, %v682
        %v684 = vrot.slane %v683, 1
        %v685 = vadd.f32 %v683, %v684
        %s686 = sld [smem:[#allocation2]]
        %v687 = vstv %s686
        %v688 = vadd.f32 %v677, %v687
        %v689 = vadd.f32 %v685, %v687
        %v692 = vrot.slane %v689, 7
        %vm693 = vcmask 1040384
        %v694 = vsel %vm693, %v688, %v692
        %v696 = vlaneseq
        %vm697 = vcmp.ge.s32.totalorder %v696, 0
        %vm698 = vcmp.lt.s32.totalorder %v696, 256
        %vm699 = vmand %vm697, %vm698
        %700 = vst.msk [vmem:[%s231] sm:$0x3] %vm699, %v694
        %s701 = sand.u32 %s138, 1
        %s702 = scalar_lea.sflag [#allocation4], %s701
        %s703 = sand.u32 %s138, 1
        %s704 = smul.addr %s703, 2
        %s705 = scalar_lea.vmem [#allocation3], %s704
        // Predicated region
        $region41: #{bpnn_wnn_forward.2} parent=39 // pred_check
          %p706 = pneg %p148
        $region42: #{bpnn_wnn_forward.2} parent=39 // pred_check_branch
          %708 = sbr.rel (%p706) target = $region44
        $region43: #{bpnn_wnn_forward.2} parent=39 // pred_region
          %s709 = smul.u32 2, %s20
          %s710 = ssub.s32 3, %s709
          %p711 = scmp.lt.s32.totalorder %s710, 2
          %s712 = scalar_select %p711, %s710, 2
          %s713 = ssub.s32 2, %s712
          %s714 = sshll.u32 %s713, 4
          %715 = vsyncadd %s702, %s714
          %p716 = scmp.ne.s32.totalorder 0, %s712
          %s717 = scalar_lea.hbm %s5, %s709
          %s718 = sshll.u32 %s712, 4
          %s719 = sshll.u32 %s705, 4
          %s720 = int_to_ptr.vmem [resolvable:$true] %s719
          %s721 = sshll.u32 %s717, 4
          %s722 = int_to_ptr.hbm [resolvable:$true] %s721
          %724 = dma.vmem_to_hbm [thread:$0]  (%p716), %s720, %s718, %s722, %s702
        $region44: #{bpnn_wnn_forward.2} parent=39 // pred_fallthru
          _
      $region40: #{bpnn_wnn_forward.2} parent=5 // pred_fallthru
        _
      %p725 = scmp.le.s32.totalorder 2, %s15
      // Predicated region
      $region45: #{bpnn_wnn_forward.2} parent=5 // pred_check
        %p726 = pneg %p725
      $region46: #{bpnn_wnn_forward.2} parent=5 // pred_check_branch
        %728 = sbr.rel (%p726) target = $region48
      $region47: #{bpnn_wnn_forward.2} parent=5 // pred_region
        %s729 = ssub.s32 %s15, 2
        // Predicated region
        $region49: #{bpnn_wnn_forward.2} parent=47 // pred_check
          %p730 = pneg %p154
        $region50: #{bpnn_wnn_forward.2} parent=47 // pred_check_branch
          %732 = sbr.rel (%p730) target = $region52
        $region51: #{bpnn_wnn_forward.2} parent=47 // pred_region
          %s733 = sand.u32 %s139, 1
          %s734 = scalar_lea.sflag [#allocation4], %s733
          %s735 = sand.u32 %s139, 1
          %s736 = smul.addr %s735, 2
          %s737 = scalar_lea.vmem [#allocation3], %s736
          %739 = dma.done %s734, 32
        $region52: #{bpnn_wnn_forward.2} parent=47 // pred_fallthru
          _
      $region48: #{bpnn_wnn_forward.2} parent=5 // pred_fallthru
        _
    $region6: #{bpnn_wnn_forward.2} parent=1 // loop_footer
      %s19 = sadd.s32 1, %s15
    $region7: #{bpnn_wnn_forward.2} parent=1 // loop_footer_branch
      %14 = sbr.rel target = $region3
    $region8: #{bpnn_wnn_forward.2} parent=1 // loop_exit
      _
    %740 = vsyncpa [#allocation4], 1
    %s741 = scalar_lea.sflag [#allocation4], 1
    %742 = vsyncpa %s741, 1

</llo_original>
